<compile_context>
chip_gen: v7x
topology: tpu7x:2x2x1
jax: 0.10.0
libtpu: 0.0.40
codegen_flags: <defaults>
</compile_context>

<pallas_src>
from functools import partial

import jax
import jax.numpy as jnp
from jax import lax
from jax.experimental import pallas as pl
from jax.experimental.pallas import tpu as pltpu

EPS = 1e-7
_SUB, _LANE = 8, 128
_FRAMES_PER_CHUNK = _SUB * _LANE  # 1024 frames per dense [8, 128] chunk


def _recip(x):
    """Reciprocal via EUP approx + one Newton-Raphson step (~f32 accurate)."""
    y = pl.reciprocal(x, approx=True)
    return y * (2.0 - x * y)


def _lpc_kernel(frames_ref, out_ref, *, num_code: int):
    """Per-tile LPC.

    frames_ref: [CPB, w, 8, 128] f32 -- CPB chunks of 1024 frames, window axis
                outermost per chunk, frame index packed dense on (sublane, lane).
    out_ref:    [CPB, num_code, 8, 128] f32 -- coefficients, same packing.
    """
    w = frames_ref.shape[1]

    def chunk_body(c, carry):
        x = frames_ref[c]                      # [w, 8, 128]
        xs = [x[n] for n in range(w)]          # w dense [8,128] vregs

        # Circular autocorrelation r[k] = sum_n x[n] * x[(n+k) mod w],
        # lags 0..num_code. Pure dense VALU mul/add chains, no slices/rolls.
        r = []
        for k in range(num_code + 1):
            acc = xs[0] * xs[k % w]
            for n in range(1, w):
                acc = acc + xs[n] * xs[(n + k) % w]
            r.append(acc)                      # [8, 128]

        # Levinson-Durbin (solve_toeplitz), fully unrolled (num_code is small).
        sol = [jnp.ones_like(r[0]), -r[1] * _recip(jnp.maximum(r[0], EPS))]
        extra = r[0] + r[1] * sol[1]
        for k in range(1, num_code):
            num = sol[0] * r[k + 1]
            for j in range(1, k + 1):
                num = num + sol[j] * r[k + 1 - j]
            lam = -num * _recip(jnp.maximum(extra, EPS))
            aug = sol + [jnp.zeros_like(r[0])]          # length k + 2
            sol = [aug[j] + lam * aug[k + 1 - j] for j in range(k + 2)]
            extra = (1.0 - lam * lam) * extra

        # One fused, fully dense [num_code, 8, 128] store per chunk.
        out_ref[c] = jnp.stack(sol[1:num_code + 1], axis=0).astype(out_ref.dtype)
        return carry

    lax.fori_loop(0, frames_ref.shape[0], chunk_body, 0)


def _pick_chunks_per_block(n_chunks: int, windows: int, num_code: int, *,
                           budget_bytes: int = 4 << 20, min_steps: int = 1) -> int:
    """Chunks per grid step from a byte budget (in + out, single-buffered).

    Only shrinks the tile to create >= min_steps grid steps (min_steps > 1 is
    only requested for multi-TensorCore chips, i.e. v7x)."""
    chunk_bytes = (windows + num_code) * _FRAMES_PER_CHUNK * 4
    cpb = int(max(1, min(n_chunks, budget_bytes // max(1, chunk_bytes))))
    while cpb > 1 and pl.cdiv(n_chunks, cpb) < min_steps:
        cpb = max(1, cpb // 2)
    return cpb


def lpc_forward(inputs: jax.Array, num_code: int, windows: int, strides: int):
    """LPC forward pass. inputs: float32 [B, T] -> [B, T//strides + 1, num_code]."""
    B, T = inputs.shape
    w = windows
    assert 1 <= num_code and num_code + 1 <= w, "requires 1 <= num_code < windows"
    num_frames = T // strides + 1
    rows = B * num_frames

    # v5e/v6e (1 TC): never shrink tiles just to manufacture grid steps.
    # v7x (2 TCs): keep >= 2 steps when the problem is big enough.
    try:
        n_cores = int(getattr(jax.devices()[0], "num_cores", 1) or 1)
    except Exception:  # pragma: no cover - defensive
        n_cores = 1
    min_steps = max(1, n_cores)

    n_chunks = int(pl.cdiv(rows, _FRAMES_PER_CHUNK))
    cpb = _pick_chunks_per_block(n_chunks, w, num_code, min_steps=min_steps)
    n_chunks_p = int(pl.cdiv(n_chunks, cpb)) * cpb
    rows_p = n_chunks_p * _FRAMES_PER_CHUNK

    # Framing: a single gather that emits the packed kernel layout
    # [n_chunks_p, w, 8, 128] directly (transpose + row padding folded in).
    padded = jnp.pad(inputs.astype(jnp.float32), ((0, 0), (0, w)))
    r_idx = (jnp.arange(n_chunks_p)[:, None, None, None] * _FRAMES_PER_CHUNK
             + jnp.arange(_SUB)[None, None, :, None] * _LANE
             + jnp.arange(_LANE)[None, None, None, :])            # [NCH,1,8,128]
    b_idx = jnp.minimum(r_idx // num_frames, B - 1)               # clamp pad rows
    f_idx = jnp.where(r_idx < rows, r_idx % num_frames, 0)
    pos = f_idx * strides + jnp.arange(w)[None, :, None, None]    # [NCH,w,8,128]
    frames = padded[b_idx, pos]                                   # [NCH,w,8,128]

    block_in = cpb * w * _FRAMES_PER_CHUNK * 4
    block_out = cpb * num_code * _FRAMES_PER_CHUNK * 4
    vmem_limit = int(min(100 << 20,
                         max(32 << 20, 2 * (block_in + block_out) + (8 << 20))))

    out_packed = pl.pallas_call(
        partial(_lpc_kernel, num_code=num_code),
        out_shape=jax.ShapeDtypeStruct((n_chunks_p, num_code, _SUB, _LANE),
                                       jnp.float32),
        grid=(n_chunks_p // cpb,),
        in_specs=[pl.BlockSpec((cpb, w, _SUB, _LANE), lambda i: (i, 0, 0, 0))],
        out_specs=pl.BlockSpec((cpb, num_code, _SUB, _LANE),
                               lambda i: (i, 0, 0, 0)),
        compiler_params=pltpu.CompilerParams(
            dimension_semantics=("parallel",),
            vmem_limit_bytes=vmem_limit),
    )(frames)

    out = out_packed.transpose(1, 0, 2, 3).reshape(num_code, rows_p)
    return out[:, :rows].T.reshape(B, num_frames, num_code)


# ----------------------- pure-JAX reference (for checking) -----------------------
def _ref_lpc(inputs, num_code, windows, strides):
    B, T = inputs.shape
    w = windows
    padded = jnp.pad(inputs, ((0, 0), (0, w)))
    num_frames = T // strides + 1
    idx = jnp.arange(num_frames)[:, None] * strides + jnp.arange(w)[None, :]
    frames = padded[:, idx]                            # [B, NF, w]
    fft = jnp.fft.rfft(frames, axis=-1)
    corr = jnp.fft.irfft(jnp.abs(fft) ** 2, n=w, axis=-1)[..., : num_code + 1]

    sol = jnp.concatenate(
        [jnp.ones_like(corr[..., :1]),
         (-corr[..., 1] / jnp.maximum(corr[..., 0], EPS))[..., None]], axis=-1)
    extra = corr[..., 0] + corr[..., 1] * sol[..., 1]
    for k in range(1, num_code):
        lam = (-sol[..., : k + 1] * jnp.flip(corr[..., 1:k + 2], axis=-1)).sum(-1)
        lam = lam / jnp.maximum(extra, EPS)
        aug = jnp.concatenate([sol, jnp.zeros_like(sol[..., :1])], axis=-1)
        sol = aug + lam[..., None] * jnp.flip(aug, axis=-1)
        extra = (1.0 - lam ** 2) * extra
    return sol[..., 1:]


if __name__ == "__main__":
    num_code, windows, strides = 8, 16, 8
    B, T = 2, 64

    key = jax.random.PRNGKey(0)
    inputs = jax.random.normal(key, (B, T), dtype=jnp.float32)

    fn = jax.jit(lpc_forward, static_argnums=(1, 2, 3))
    out = jax.block_until_ready(fn(inputs, num_code, windows, strides))

    ref = _ref_lpc(inputs, num_code, windows, strides)
    assert out.shape == (B, T // strides + 1, num_code), out.shape
    assert jnp.allclose(out, ref, atol=2e-3, rtol=2e-3), \
        f"max abs diff {jnp.max(jnp.abs(out - ref))}"

    print("KERNEL_OK")
</pallas_src>

<mosaic_0001>
module attributes {stable_mosaic.version = 11 : i64} {
  func.func @_lpc_kernel(%arg0: i32, %arg1: memref<1x16x8x128xf32, #tpu.memory_space<vmem>>, %arg2: memref<1x8x8x128xf32, #tpu.memory_space<vmem>>) attributes {dimension_semantics = [#tpu.dimension_semantics<parallel>], iteration_bounds = array<i64: 1>, scalar_prefetch = 0 : i64, scratch_operands = 0 : i64, tpu.core_type = #tpu.core_type<tc>, window_params = [{transform_indices = @transform_0, window_bounds = array<i64: 1, 16, 8, 128>}, {transform_indices = @transform_1, window_bounds = array<i64: 1, 8, 8, 128>}]} {
    %c0_i32 = arith.constant 0 : i32
    %0 = arith.index_cast %c0_i32 : i32 to index
    %c0 = arith.constant 0 : index
    %c0_0 = arith.constant 0 : index
    %c0_1 = arith.constant 0 : index
    %1 = vector.load %arg1[%0, %c0, %c0_0, %c0_1] : memref<1x16x8x128xf32, #tpu.memory_space<vmem>>, vector<1x16x8x128xf32>
    %2 = vector.shape_cast %1 : vector<1x16x8x128xf32> to vector<16x8x128xf32>
    %3 = vector.extract_strided_slice %2 {offsets = [0, 0, 0], sizes = [1, 8, 128], strides = [1, 1, 1]} : vector<16x8x128xf32> to vector<1x8x128xf32>
    %4 = vector.shape_cast %3 : vector<1x8x128xf32> to vector<8x128xf32>
    %5 = vector.extract_strided_slice %2 {offsets = [1, 0, 0], sizes = [1, 8, 128], strides = [1, 1, 1]} : vector<16x8x128xf32> to vector<1x8x128xf32>
    %6 = vector.shape_cast %5 : vector<1x8x128xf32> to vector<8x128xf32>
    %7 = vector.extract_strided_slice %2 {offsets = [2, 0, 0], sizes = [1, 8, 128], strides = [1, 1, 1]} : vector<16x8x128xf32> to vector<1x8x128xf32>
    %8 = vector.shape_cast %7 : vector<1x8x128xf32> to vector<8x128xf32>
    %9 = vector.extract_strided_slice %2 {offsets = [3, 0, 0], sizes = [1, 8, 128], strides = [1, 1, 1]} : vector<16x8x128xf32> to vector<1x8x128xf32>
    %10 = vector.shape_cast %9 : vector<1x8x128xf32> to vector<8x128xf32>
    %11 = vector.extract_strided_slice %2 {offsets = [4, 0, 0], sizes = [1, 8, 128], strides = [1, 1, 1]} : vector<16x8x128xf32> to vector<1x8x128xf32>
    %12 = vector.shape_cast %11 : vector<1x8x128xf32> to vector<8x128xf32>
    %13 = vector.extract_strided_slice %2 {offsets = [5, 0, 0], sizes = [1, 8, 128], strides = [1, 1, 1]} : vector<16x8x128xf32> to vector<1x8x128xf32>
    %14 = vector.shape_cast %13 : vector<1x8x128xf32> to vector<8x128xf32>
    %15 = vector.extract_strided_slice %2 {offsets = [6, 0, 0], sizes = [1, 8, 128], strides = [1, 1, 1]} : vector<16x8x128xf32> to vector<1x8x128xf32>
    %16 = vector.shape_cast %15 : vector<1x8x128xf32> to vector<8x128xf32>
    %17 = vector.extract_strided_slice %2 {offsets = [7, 0, 0], sizes = [1, 8, 128], strides = [1, 1, 1]} : vector<16x8x128xf32> to vector<1x8x128xf32>
    %18 = vector.shape_cast %17 : vector<1x8x128xf32> to vector<8x128xf32>
    %19 = vector.extract_strided_slice %2 {offsets = [8, 0, 0], sizes = [1, 8, 128], strides = [1, 1, 1]} : vector<16x8x128xf32> to vector<1x8x128xf32>
    %20 = vector.shape_cast %19 : vector<1x8x128xf32> to vector<8x128xf32>
    %21 = vector.extract_strided_slice %2 {offsets = [9, 0, 0], sizes = [1, 8, 128], strides = [1, 1, 1]} : vector<16x8x128xf32> to vector<1x8x128xf32>
    %22 = vector.shape_cast %21 : vector<1x8x128xf32> to vector<8x128xf32>
    %23 = vector.extract_strided_slice %2 {offsets = [10, 0, 0], sizes = [1, 8, 128], strides = [1, 1, 1]} : vector<16x8x128xf32> to vector<1x8x128xf32>
    %24 = vector.shape_cast %23 : vector<1x8x128xf32> to vector<8x128xf32>
    %25 = vector.extract_strided_slice %2 {offsets = [11, 0, 0], sizes = [1, 8, 128], strides = [1, 1, 1]} : vector<16x8x128xf32> to vector<1x8x128xf32>
    %26 = vector.shape_cast %25 : vector<1x8x128xf32> to vector<8x128xf32>
    %27 = vector.extract_strided_slice %2 {offsets = [12, 0, 0], sizes = [1, 8, 128], strides = [1, 1, 1]} : vector<16x8x128xf32> to vector<1x8x128xf32>
    %28 = vector.shape_cast %27 : vector<1x8x128xf32> to vector<8x128xf32>
    %29 = vector.extract_strided_slice %2 {offsets = [13, 0, 0], sizes = [1, 8, 128], strides = [1, 1, 1]} : vector<16x8x128xf32> to vector<1x8x128xf32>
    %30 = vector.shape_cast %29 : vector<1x8x128xf32> to vector<8x128xf32>
    %31 = vector.extract_strided_slice %2 {offsets = [14, 0, 0], sizes = [1, 8, 128], strides = [1, 1, 1]} : vector<16x8x128xf32> to vector<1x8x128xf32>
    %32 = vector.shape_cast %31 : vector<1x8x128xf32> to vector<8x128xf32>
    %33 = vector.extract_strided_slice %2 {offsets = [15, 0, 0], sizes = [1, 8, 128], strides = [1, 1, 1]} : vector<16x8x128xf32> to vector<1x8x128xf32>
    %34 = vector.shape_cast %33 : vector<1x8x128xf32> to vector<8x128xf32>
    %35 = arith.mulf %4, %4 : vector<8x128xf32>
    %36 = arith.mulf %6, %6 : vector<8x128xf32>
    %37 = arith.addf %35, %36 : vector<8x128xf32>
    %38 = arith.mulf %8, %8 : vector<8x128xf32>
    %39 = arith.addf %37, %38 : vector<8x128xf32>
    %40 = arith.mulf %10, %10 : vector<8x128xf32>
    %41 = arith.addf %39, %40 : vector<8x128xf32>
    %42 = arith.mulf %12, %12 : vector<8x128xf32>
    %43 = arith.addf %41, %42 : vector<8x128xf32>
    %44 = arith.mulf %14, %14 : vector<8x128xf32>
    %45 = arith.addf %43, %44 : vector<8x128xf32>
    %46 = arith.mulf %16, %16 : vector<8x128xf32>
    %47 = arith.addf %45, %46 : vector<8x128xf32>
    %48 = arith.mulf %18, %18 : vector<8x128xf32>
    %49 = arith.addf %47, %48 : vector<8x128xf32>
    %50 = arith.mulf %20, %20 : vector<8x128xf32>
    %51 = arith.addf %49, %50 : vector<8x128xf32>
    %52 = arith.mulf %22, %22 : vector<8x128xf32>
    %53 = arith.addf %51, %52 : vector<8x128xf32>
    %54 = arith.mulf %24, %24 : vector<8x128xf32>
    %55 = arith.addf %53, %54 : vector<8x128xf32>
    %56 = arith.mulf %26, %26 : vector<8x128xf32>
    %57 = arith.addf %55, %56 : vector<8x128xf32>
    %58 = arith.mulf %28, %28 : vector<8x128xf32>
    %59 = arith.addf %57, %58 : vector<8x128xf32>
    %60 = arith.mulf %30, %30 : vector<8x128xf32>
    %61 = arith.addf %59, %60 : vector<8x128xf32>
    %62 = arith.mulf %32, %32 : vector<8x128xf32>
    %63 = arith.addf %61, %62 : vector<8x128xf32>
    %64 = arith.mulf %34, %34 : vector<8x128xf32>
    %65 = arith.addf %63, %64 : vector<8x128xf32>
    %66 = arith.mulf %4, %6 : vector<8x128xf32>
    %67 = arith.mulf %6, %8 : vector<8x128xf32>
    %68 = arith.addf %66, %67 : vector<8x128xf32>
    %69 = arith.mulf %8, %10 : vector<8x128xf32>
    %70 = arith.addf %68, %69 : vector<8x128xf32>
    %71 = arith.mulf %10, %12 : vector<8x128xf32>
    %72 = arith.addf %70, %71 : vector<8x128xf32>
    %73 = arith.mulf %12, %14 : vector<8x128xf32>
    %74 = arith.addf %72, %73 : vector<8x128xf32>
    %75 = arith.mulf %14, %16 : vector<8x128xf32>
    %76 = arith.addf %74, %75 : vector<8x128xf32>
    %77 = arith.mulf %16, %18 : vector<8x128xf32>
    %78 = arith.addf %76, %77 : vector<8x128xf32>
    %79 = arith.mulf %18, %20 : vector<8x128xf32>
    %80 = arith.addf %78, %79 : vector<8x128xf32>
    %81 = arith.mulf %20, %22 : vector<8x128xf32>
    %82 = arith.addf %80, %81 : vector<8x128xf32>
    %83 = arith.mulf %22, %24 : vector<8x128xf32>
    %84 = arith.addf %82, %83 : vector<8x128xf32>
    %85 = arith.mulf %24, %26 : vector<8x128xf32>
    %86 = arith.addf %84, %85 : vector<8x128xf32>
    %87 = arith.mulf %26, %28 : vector<8x128xf32>
    %88 = arith.addf %86, %87 : vector<8x128xf32>
    %89 = arith.mulf %28, %30 : vector<8x128xf32>
    %90 = arith.addf %88, %89 : vector<8x128xf32>
    %91 = arith.mulf %30, %32 : vector<8x128xf32>
    %92 = arith.addf %90, %91 : vector<8x128xf32>
    %93 = arith.mulf %32, %34 : vector<8x128xf32>
    %94 = arith.addf %92, %93 : vector<8x128xf32>
    %95 = arith.mulf %34, %4 : vector<8x128xf32>
    %96 = arith.addf %94, %95 : vector<8x128xf32>
    %97 = arith.mulf %4, %8 : vector<8x128xf32>
    %98 = arith.mulf %6, %10 : vector<8x128xf32>
    %99 = arith.addf %97, %98 : vector<8x128xf32>
    %100 = arith.mulf %8, %12 : vector<8x128xf32>
    %101 = arith.addf %99, %100 : vector<8x128xf32>
    %102 = arith.mulf %10, %14 : vector<8x128xf32>
    %103 = arith.addf %101, %102 : vector<8x128xf32>
    %104 = arith.mulf %12, %16 : vector<8x128xf32>
    %105 = arith.addf %103, %104 : vector<8x128xf32>
    %106 = arith.mulf %14, %18 : vector<8x128xf32>
    %107 = arith.addf %105, %106 : vector<8x128xf32>
    %108 = arith.mulf %16, %20 : vector<8x128xf32>
    %109 = arith.addf %107, %108 : vector<8x128xf32>
    %110 = arith.mulf %18, %22 : vector<8x128xf32>
    %111 = arith.addf %109, %110 : vector<8x128xf32>
    %112 = arith.mulf %20, %24 : vector<8x128xf32>
    %113 = arith.addf %111, %112 : vector<8x128xf32>
    %114 = arith.mulf %22, %26 : vector<8x128xf32>
    %115 = arith.addf %113, %114 : vector<8x128xf32>
    %116 = arith.mulf %24, %28 : vector<8x128xf32>
    %117 = arith.addf %115, %116 : vector<8x128xf32>
    %118 = arith.mulf %26, %30 : vector<8x128xf32>
    %119 = arith.addf %117, %118 : vector<8x128xf32>
    %120 = arith.mulf %28, %32 : vector<8x128xf32>
    %121 = arith.addf %119, %120 : vector<8x128xf32>
    %122 = arith.mulf %30, %34 : vector<8x128xf32>
    %123 = arith.addf %121, %122 : vector<8x128xf32>
    %124 = arith.mulf %32, %4 : vector<8x128xf32>
    %125 = arith.addf %123, %124 : vector<8x128xf32>
    %126 = arith.mulf %34, %6 : vector<8x128xf32>
    %127 = arith.addf %125, %126 : vector<8x128xf32>
    %128 = arith.mulf %4, %10 : vector<8x128xf32>
    %129 = arith.mulf %6, %12 : vector<8x128xf32>
    %130 = arith.addf %128, %129 : vector<8x128xf32>
    %131 = arith.mulf %8, %14 : vector<8x128xf32>
    %132 = arith.addf %130, %131 : vector<8x128xf32>
    %133 = arith.mulf %10, %16 : vector<8x128xf32>
    %134 = arith.addf %132, %133 : vector<8x128xf32>
    %135 = arith.mulf %12, %18 : vector<8x128xf32>
    %136 = arith.addf %134, %135 : vector<8x128xf32>
    %137 = arith.mulf %14, %20 : vector<8x128xf32>
    %138 = arith.addf %136, %137 : vector<8x128xf32>
    %139 = arith.mulf %16, %22 : vector<8x128xf32>
    %140 = arith.addf %138, %139 : vector<8x128xf32>
    %141 = arith.mulf %18, %24 : vector<8x128xf32>
    %142 = arith.addf %140, %141 : vector<8x128xf32>
    %143 = arith.mulf %20, %26 : vector<8x128xf32>
    %144 = arith.addf %142, %143 : vector<8x128xf32>
    %145 = arith.mulf %22, %28 : vector<8x128xf32>
    %146 = arith.addf %144, %145 : vector<8x128xf32>
    %147 = arith.mulf %24, %30 : vector<8x128xf32>
    %148 = arith.addf %146, %147 : vector<8x128xf32>
    %149 = arith.mulf %26, %32 : vector<8x128xf32>
    %150 = arith.addf %148, %149 : vector<8x128xf32>
    %151 = arith.mulf %28, %34 : vector<8x128xf32>
    %152 = arith.addf %150, %151 : vector<8x128xf32>
    %153 = arith.mulf %30, %4 : vector<8x128xf32>
    %154 = arith.addf %152, %153 : vector<8x128xf32>
    %155 = arith.mulf %32, %6 : vector<8x128xf32>
    %156 = arith.addf %154, %155 : vector<8x128xf32>
    %157 = arith.mulf %34, %8 : vector<8x128xf32>
    %158 = arith.addf %156, %157 : vector<8x128xf32>
    %159 = arith.mulf %4, %12 : vector<8x128xf32>
    %160 = arith.mulf %6, %14 : vector<8x128xf32>
    %161 = arith.addf %159, %160 : vector<8x128xf32>
    %162 = arith.mulf %8, %16 : vector<8x128xf32>
    %163 = arith.addf %161, %162 : vector<8x128xf32>
    %164 = arith.mulf %10, %18 : vector<8x128xf32>
    %165 = arith.addf %163, %164 : vector<8x128xf32>
    %166 = arith.mulf %12, %20 : vector<8x128xf32>
    %167 = arith.addf %165, %166 : vector<8x128xf32>
    %168 = arith.mulf %14, %22 : vector<8x128xf32>
    %169 = arith.addf %167, %168 : vector<8x128xf32>
    %170 = arith.mulf %16, %24 : vector<8x128xf32>
    %171 = arith.addf %169, %170 : vector<8x128xf32>
    %172 = arith.mulf %18, %26 : vector<8x128xf32>
    %173 = arith.addf %171, %172 : vector<8x128xf32>
    %174 = arith.mulf %20, %28 : vector<8x128xf32>
    %175 = arith.addf %173, %174 : vector<8x128xf32>
    %176 = arith.mulf %22, %30 : vector<8x128xf32>
    %177 = arith.addf %175, %176 : vector<8x128xf32>
    %178 = arith.mulf %24, %32 : vector<8x128xf32>
    %179 = arith.addf %177, %178 : vector<8x128xf32>
    %180 = arith.mulf %26, %34 : vector<8x128xf32>
    %181 = arith.addf %179, %180 : vector<8x128xf32>
    %182 = arith.mulf %28, %4 : vector<8x128xf32>
    %183 = arith.addf %181, %182 : vector<8x128xf32>
    %184 = arith.mulf %30, %6 : vector<8x128xf32>
    %185 = arith.addf %183, %184 : vector<8x128xf32>
    %186 = arith.mulf %32, %8 : vector<8x128xf32>
    %187 = arith.addf %185, %186 : vector<8x128xf32>
    %188 = arith.mulf %34, %10 : vector<8x128xf32>
    %189 = arith.addf %187, %188 : vector<8x128xf32>
    %190 = arith.mulf %4, %14 : vector<8x128xf32>
    %191 = arith.mulf %6, %16 : vector<8x128xf32>
    %192 = arith.addf %190, %191 : vector<8x128xf32>
    %193 = arith.mulf %8, %18 : vector<8x128xf32>
    %194 = arith.addf %192, %193 : vector<8x128xf32>
    %195 = arith.mulf %10, %20 : vector<8x128xf32>
    %196 = arith.addf %194, %195 : vector<8x128xf32>
    %197 = arith.mulf %12, %22 : vector<8x128xf32>
    %198 = arith.addf %196, %197 : vector<8x128xf32>
    %199 = arith.mulf %14, %24 : vector<8x128xf32>
    %200 = arith.addf %198, %199 : vector<8x128xf32>
    %201 = arith.mulf %16, %26 : vector<8x128xf32>
    %202 = arith.addf %200, %201 : vector<8x128xf32>
    %203 = arith.mulf %18, %28 : vector<8x128xf32>
    %204 = arith.addf %202, %203 : vector<8x128xf32>
    %205 = arith.mulf %20, %30 : vector<8x128xf32>
    %206 = arith.addf %204, %205 : vector<8x128xf32>
    %207 = arith.mulf %22, %32 : vector<8x128xf32>
    %208 = arith.addf %206, %207 : vector<8x128xf32>
    %209 = arith.mulf %24, %34 : vector<8x128xf32>
    %210 = arith.addf %208, %209 : vector<8x128xf32>
    %211 = arith.mulf %26, %4 : vector<8x128xf32>
    %212 = arith.addf %210, %211 : vector<8x128xf32>
    %213 = arith.mulf %28, %6 : vector<8x128xf32>
    %214 = arith.addf %212, %213 : vector<8x128xf32>
    %215 = arith.mulf %30, %8 : vector<8x128xf32>
    %216 = arith.addf %214, %215 : vector<8x128xf32>
    %217 = arith.mulf %32, %10 : vector<8x128xf32>
    %218 = arith.addf %216, %217 : vector<8x128xf32>
    %219 = arith.mulf %34, %12 : vector<8x128xf32>
    %220 = arith.addf %218, %219 : vector<8x128xf32>
    %221 = arith.mulf %4, %16 : vector<8x128xf32>
    %222 = arith.mulf %6, %18 : vector<8x128xf32>
    %223 = arith.addf %221, %222 : vector<8x128xf32>
    %224 = arith.mulf %8, %20 : vector<8x128xf32>
    %225 = arith.addf %223, %224 : vector<8x128xf32>
    %226 = arith.mulf %10, %22 : vector<8x128xf32>
    %227 = arith.addf %225, %226 : vector<8x128xf32>
    %228 = arith.mulf %12, %24 : vector<8x128xf32>
    %229 = arith.addf %227, %228 : vector<8x128xf32>
    %230 = arith.mulf %14, %26 : vector<8x128xf32>
    %231 = arith.addf %229, %230 : vector<8x128xf32>
    %232 = arith.mulf %16, %28 : vector<8x128xf32>
    %233 = arith.addf %231, %232 : vector<8x128xf32>
    %234 = arith.mulf %18, %30 : vector<8x128xf32>
    %235 = arith.addf %233, %234 : vector<8x128xf32>
    %236 = arith.mulf %20, %32 : vector<8x128xf32>
    %237 = arith.addf %235, %236 : vector<8x128xf32>
    %238 = arith.mulf %22, %34 : vector<8x128xf32>
    %239 = arith.addf %237, %238 : vector<8x128xf32>
    %240 = arith.mulf %24, %4 : vector<8x128xf32>
    %241 = arith.addf %239, %240 : vector<8x128xf32>
    %242 = arith.mulf %26, %6 : vector<8x128xf32>
    %243 = arith.addf %241, %242 : vector<8x128xf32>
    %244 = arith.mulf %28, %8 : vector<8x128xf32>
    %245 = arith.addf %243, %244 : vector<8x128xf32>
    %246 = arith.mulf %30, %10 : vector<8x128xf32>
    %247 = arith.addf %245, %246 : vector<8x128xf32>
    %248 = arith.mulf %32, %12 : vector<8x128xf32>
    %249 = arith.addf %247, %248 : vector<8x128xf32>
    %250 = arith.mulf %34, %14 : vector<8x128xf32>
    %251 = arith.addf %249, %250 : vector<8x128xf32>
    %252 = arith.mulf %4, %18 : vector<8x128xf32>
    %253 = arith.mulf %6, %20 : vector<8x128xf32>
    %254 = arith.addf %252, %253 : vector<8x128xf32>
    %255 = arith.mulf %8, %22 : vector<8x128xf32>
    %256 = arith.addf %254, %255 : vector<8x128xf32>
    %257 = arith.mulf %10, %24 : vector<8x128xf32>
    %258 = arith.addf %256, %257 : vector<8x128xf32>
    %259 = arith.mulf %12, %26 : vector<8x128xf32>
    %260 = arith.addf %258, %259 : vector<8x128xf32>
    %261 = arith.mulf %14, %28 : vector<8x128xf32>
    %262 = arith.addf %260, %261 : vector<8x128xf32>
    %263 = arith.mulf %16, %30 : vector<8x128xf32>
    %264 = arith.addf %262, %263 : vector<8x128xf32>
    %265 = arith.mulf %18, %32 : vector<8x128xf32>
    %266 = arith.addf %264, %265 : vector<8x128xf32>
    %267 = arith.mulf %20, %34 : vector<8x128xf32>
    %268 = arith.addf %266, %267 : vector<8x128xf32>
    %269 = arith.mulf %22, %4 : vector<8x128xf32>
    %270 = arith.addf %268, %269 : vector<8x128xf32>
    %271 = arith.mulf %24, %6 : vector<8x128xf32>
    %272 = arith.addf %270, %271 : vector<8x128xf32>
    %273 = arith.mulf %26, %8 : vector<8x128xf32>
    %274 = arith.addf %272, %273 : vector<8x128xf32>
    %275 = arith.mulf %28, %10 : vector<8x128xf32>
    %276 = arith.addf %274, %275 : vector<8x128xf32>
    %277 = arith.mulf %30, %12 : vector<8x128xf32>
    %278 = arith.addf %276, %277 : vector<8x128xf32>
    %279 = arith.mulf %32, %14 : vector<8x128xf32>
    %280 = arith.addf %278, %279 : vector<8x128xf32>
    %281 = arith.mulf %34, %16 : vector<8x128xf32>
    %282 = arith.addf %280, %281 : vector<8x128xf32>
    %283 = arith.mulf %4, %20 : vector<8x128xf32>
    %284 = arith.mulf %6, %22 : vector<8x128xf32>
    %285 = arith.addf %283, %284 : vector<8x128xf32>
    %286 = arith.mulf %8, %24 : vector<8x128xf32>
    %287 = arith.addf %285, %286 : vector<8x128xf32>
    %288 = arith.mulf %10, %26 : vector<8x128xf32>
    %289 = arith.addf %287, %288 : vector<8x128xf32>
    %290 = arith.mulf %12, %28 : vector<8x128xf32>
    %291 = arith.addf %289, %290 : vector<8x128xf32>
    %292 = arith.mulf %14, %30 : vector<8x128xf32>
    %293 = arith.addf %291, %292 : vector<8x128xf32>
    %294 = arith.mulf %16, %32 : vector<8x128xf32>
    %295 = arith.addf %293, %294 : vector<8x128xf32>
    %296 = arith.mulf %18, %34 : vector<8x128xf32>
    %297 = arith.addf %295, %296 : vector<8x128xf32>
    %298 = arith.mulf %20, %4 : vector<8x128xf32>
    %299 = arith.addf %297, %298 : vector<8x128xf32>
    %300 = arith.mulf %22, %6 : vector<8x128xf32>
    %301 = arith.addf %299, %300 : vector<8x128xf32>
    %302 = arith.mulf %24, %8 : vector<8x128xf32>
    %303 = arith.addf %301, %302 : vector<8x128xf32>
    %304 = arith.mulf %26, %10 : vector<8x128xf32>
    %305 = arith.addf %303, %304 : vector<8x128xf32>
    %306 = arith.mulf %28, %12 : vector<8x128xf32>
    %307 = arith.addf %305, %306 : vector<8x128xf32>
    %308 = arith.mulf %30, %14 : vector<8x128xf32>
    %309 = arith.addf %307, %308 : vector<8x128xf32>
    %310 = arith.mulf %32, %16 : vector<8x128xf32>
    %311 = arith.addf %309, %310 : vector<8x128xf32>
    %312 = arith.mulf %34, %18 : vector<8x128xf32>
    %313 = arith.addf %311, %312 : vector<8x128xf32>
    %cst = arith.constant 1.000000e+00 : f32
    %314 = vector.broadcast %cst : f32 to vector<8x128xf32>
    %cst_2 = arith.constant 0.000000e+00 : f32
    %315 = vector.broadcast %cst_2 : f32 to vector<8x128xf32>
    %316 = arith.subf %315, %96 : vector<8x128xf32>
    %cst_3 = arith.constant 1.000000e-07 : f32
    %317 = vector.broadcast %cst_3 : f32 to vector<8x128xf32>
    %318 = arith.maximumf %65, %317 : vector<8x128xf32>
    %319 = tpu.reciprocal %318 {approx = true} : vector<8x128xf32> -> vector<8x128xf32>
    %320 = arith.mulf %318, %319 : vector<8x128xf32>
    %cst_4 = arith.constant 2.000000e+00 : f32
    %321 = vector.broadcast %cst_4 : f32 to vector<8x128xf32>
    %322 = arith.subf %321, %320 : vector<8x128xf32>
    %323 = arith.mulf %319, %322 : vector<8x128xf32>
    %324 = arith.mulf %316, %323 : vector<8x128xf32>
    %325 = arith.mulf %96, %324 : vector<8x128xf32>
    %326 = arith.addf %65, %325 : vector<8x128xf32>
    %327 = arith.mulf %314, %127 : vector<8x128xf32>
    %328 = arith.mulf %324, %96 : vector<8x128xf32>
    %329 = arith.addf %327, %328 : vector<8x128xf32>
    %cst_5 = arith.constant 0.000000e+00 : f32
    %330 = vector.broadcast %cst_5 : f32 to vector<8x128xf32>
    %331 = arith.subf %330, %329 : vector<8x128xf32>
    %cst_6 = arith.constant 1.000000e-07 : f32
    %332 = vector.broadcast %cst_6 : f32 to vector<8x128xf32>
    %333 = arith.maximumf %326, %332 : vector<8x128xf32>
    %334 = tpu.reciprocal %333 {approx = true} : vector<8x128xf32> -> vector<8x128xf32>
    %335 = arith.mulf %333, %334 : vector<8x128xf32>
    %cst_7 = arith.constant 2.000000e+00 : f32
    %336 = vector.broadcast %cst_7 : f32 to vector<8x128xf32>
    %337 = arith.subf %336, %335 : vector<8x128xf32>
    %338 = arith.mulf %334, %337 : vector<8x128xf32>
    %339 = arith.mulf %331, %338 : vector<8x128xf32>
    %cst_8 = arith.constant 0.000000e+00 : f32
    %340 = vector.broadcast %cst_8 : f32 to vector<8x128xf32>
    %341 = arith.mulf %339, %340 : vector<8x128xf32>
    %342 = arith.addf %314, %341 : vector<8x128xf32>
    %343 = arith.mulf %339, %324 : vector<8x128xf32>
    %344 = arith.addf %324, %343 : vector<8x128xf32>
    %345 = arith.mulf %339, %314 : vector<8x128xf32>
    %346 = arith.addf %340, %345 : vector<8x128xf32>
    %347 = arith.mulf %339, %339 : vector<8x128xf32>
    %cst_9 = arith.constant 1.000000e+00 : f32
    %348 = vector.broadcast %cst_9 : f32 to vector<8x128xf32>
    %349 = arith.subf %348, %347 : vector<8x128xf32>
    %350 = arith.mulf %349, %326 : vector<8x128xf32>
    %351 = arith.mulf %342, %158 : vector<8x128xf32>
    %352 = arith.mulf %344, %127 : vector<8x128xf32>
    %353 = arith.addf %351, %352 : vector<8x128xf32>
    %354 = arith.mulf %346, %96 : vector<8x128xf32>
    %355 = arith.addf %353, %354 : vector<8x128xf32>
    %cst_10 = arith.constant 0.000000e+00 : f32
    %356 = vector.broadcast %cst_10 : f32 to vector<8x128xf32>
    %357 = arith.subf %356, %355 : vector<8x128xf32>
    %cst_11 = arith.constant 1.000000e-07 : f32
    %358 = vector.broadcast %cst_11 : f32 to vector<8x128xf32>
    %359 = arith.maximumf %350, %358 : vector<8x128xf32>
    %360 = tpu.reciprocal %359 {approx = true} : vector<8x128xf32> -> vector<8x128xf32>
    %361 = arith.mulf %359, %360 : vector<8x128xf32>
    %cst_12 = arith.constant 2.000000e+00 : f32
    %362 = vector.broadcast %cst_12 : f32 to vector<8x128xf32>
    %363 = arith.subf %362, %361 : vector<8x128xf32>
    %364 = arith.mulf %360, %363 : vector<8x128xf32>
    %365 = arith.mulf %357, %364 : vector<8x128xf32>
    %cst_13 = arith.constant 0.000000e+00 : f32
    %366 = vector.broadcast %cst_13 : f32 to vector<8x128xf32>
    %367 = arith.mulf %365, %366 : vector<8x128xf32>
    %368 = arith.addf %342, %367 : vector<8x128xf32>
    %369 = arith.mulf %365, %346 : vector<8x128xf32>
    %370 = arith.addf %344, %369 : vector<8x128xf32>
    %371 = arith.mulf %365, %344 : vector<8x128xf32>
    %372 = arith.addf %346, %371 : vector<8x128xf32>
    %373 = arith.mulf %365, %342 : vector<8x128xf32>
    %374 = arith.addf %366, %373 : vector<8x128xf32>
    %375 = arith.mulf %365, %365 : vector<8x128xf32>
    %cst_14 = arith.constant 1.000000e+00 : f32
    %376 = vector.broadcast %cst_14 : f32 to vector<8x128xf32>
    %377 = arith.subf %376, %375 : vector<8x128xf32>
    %378 = arith.mulf %377, %350 : vector<8x128xf32>
    %379 = arith.mulf %368, %189 : vector<8x128xf32>
    %380 = arith.mulf %370, %158 : vector<8x128xf32>
    %381 = arith.addf %379, %380 : vector<8x128xf32>
    %382 = arith.mulf %372, %127 : vector<8x128xf32>
    %383 = arith.addf %381, %382 : vector<8x128xf32>
    %384 = arith.mulf %374, %96 : vector<8x128xf32>
    %385 = arith.addf %383, %384 : vector<8x128xf32>
    %cst_15 = arith.constant 0.000000e+00 : f32
    %386 = vector.broadcast %cst_15 : f32 to vector<8x128xf32>
    %387 = arith.subf %386, %385 : vector<8x128xf32>
    %cst_16 = arith.constant 1.000000e-07 : f32
    %388 = vector.broadcast %cst_16 : f32 to vector<8x128xf32>
    %389 = arith.maximumf %378, %388 : vector<8x128xf32>
    %390 = tpu.reciprocal %389 {approx = true} : vector<8x128xf32> -> vector<8x128xf32>
    %391 = arith.mulf %389, %390 : vector<8x128xf32>
    %cst_17 = arith.constant 2.000000e+00 : f32
    %392 = vector.broadcast %cst_17 : f32 to vector<8x128xf32>
    %393 = arith.subf %392, %391 : vector<8x128xf32>
    %394 = arith.mulf %390, %393 : vector<8x128xf32>
    %395 = arith.mulf %387, %394 : vector<8x128xf32>
    %cst_18 = arith.constant 0.000000e+00 : f32
    %396 = vector.broadcast %cst_18 : f32 to vector<8x128xf32>
    %397 = arith.mulf %395, %396 : vector<8x128xf32>
    %398 = arith.addf %368, %397 : vector<8x128xf32>
    %399 = arith.mulf %395, %374 : vector<8x128xf32>
    %400 = arith.addf %370, %399 : vector<8x128xf32>
    %401 = arith.mulf %395, %372 : vector<8x128xf32>
    %402 = arith.addf %372, %401 : vector<8x128xf32>
    %403 = arith.mulf %395, %370 : vector<8x128xf32>
    %404 = arith.addf %374, %403 : vector<8x128xf32>
    %405 = arith.mulf %395, %368 : vector<8x128xf32>
    %406 = arith.addf %396, %405 : vector<8x128xf32>
    %407 = arith.mulf %395, %395 : vector<8x128xf32>
    %cst_19 = arith.constant 1.000000e+00 : f32
    %408 = vector.broadcast %cst_19 : f32 to vector<8x128xf32>
    %409 = arith.subf %408, %407 : vector<8x128xf32>
    %410 = arith.mulf %409, %378 : vector<8x128xf32>
    %411 = arith.mulf %398, %220 : vector<8x128xf32>
    %412 = arith.mulf %400, %189 : vector<8x128xf32>
    %413 = arith.addf %411, %412 : vector<8x128xf32>
    %414 = arith.mulf %402, %158 : vector<8x128xf32>
    %415 = arith.addf %413, %414 : vector<8x128xf32>
    %416 = arith.mulf %404, %127 : vector<8x128xf32>
    %417 = arith.addf %415, %416 : vector<8x128xf32>
    %418 = arith.mulf %406, %96 : vector<8x128xf32>
    %419 = arith.addf %417, %418 : vector<8x128xf32>
    %cst_20 = arith.constant 0.000000e+00 : f32
    %420 = vector.broadcast %cst_20 : f32 to vector<8x128xf32>
    %421 = arith.subf %420, %419 : vector<8x128xf32>
    %cst_21 = arith.constant 1.000000e-07 : f32
    %422 = vector.broadcast %cst_21 : f32 to vector<8x128xf32>
    %423 = arith.maximumf %410, %422 : vector<8x128xf32>
    %424 = tpu.reciprocal %423 {approx = true} : vector<8x128xf32> -> vector<8x128xf32>
    %425 = arith.mulf %423, %424 : vector<8x128xf32>
    %cst_22 = arith.constant 2.000000e+00 : f32
    %426 = vector.broadcast %cst_22 : f32 to vector<8x128xf32>
    %427 = arith.subf %426, %425 : vector<8x128xf32>
    %428 = arith.mulf %424, %427 : vector<8x128xf32>
    %429 = arith.mulf %421, %428 : vector<8x128xf32>
    %cst_23 = arith.constant 0.000000e+00 : f32
    %430 = vector.broadcast %cst_23 : f32 to vector<8x128xf32>
    %431 = arith.mulf %429, %430 : vector<8x128xf32>
    %432 = arith.addf %398, %431 : vector<8x128xf32>
    %433 = arith.mulf %429, %406 : vector<8x128xf32>
    %434 = arith.addf %400, %433 : vector<8x128xf32>
    %435 = arith.mulf %429, %404 : vector<8x128xf32>
    %436 = arith.addf %402, %435 : vector<8x128xf32>
    %437 = arith.mulf %429, %402 : vector<8x128xf32>
    %438 = arith.addf %404, %437 : vector<8x128xf32>
    %439 = arith.mulf %429, %400 : vector<8x128xf32>
    %440 = arith.addf %406, %439 : vector<8x128xf32>
    %441 = arith.mulf %429, %398 : vector<8x128xf32>
    %442 = arith.addf %430, %441 : vector<8x128xf32>
    %443 = arith.mulf %429, %429 : vector<8x128xf32>
    %cst_24 = arith.constant 1.000000e+00 : f32
    %444 = vector.broadcast %cst_24 : f32 to vector<8x128xf32>
    %445 = arith.subf %444, %443 : vector<8x128xf32>
    %446 = arith.mulf %445, %410 : vector<8x128xf32>
    %447 = arith.mulf %432, %251 : vector<8x128xf32>
    %448 = arith.mulf %434, %220 : vector<8x128xf32>
    %449 = arith.addf %447, %448 : vector<8x128xf32>
    %450 = arith.mulf %436, %189 : vector<8x128xf32>
    %451 = arith.addf %449, %450 : vector<8x128xf32>
    %452 = arith.mulf %438, %158 : vector<8x128xf32>
    %453 = arith.addf %451, %452 : vector<8x128xf32>
    %454 = arith.mulf %440, %127 : vector<8x128xf32>
    %455 = arith.addf %453, %454 : vector<8x128xf32>
    %456 = arith.mulf %442, %96 : vector<8x128xf32>
    %457 = arith.addf %455, %456 : vector<8x128xf32>
    %cst_25 = arith.constant 0.000000e+00 : f32
    %458 = vector.broadcast %cst_25 : f32 to vector<8x128xf32>
    %459 = arith.subf %458, %457 : vector<8x128xf32>
    %cst_26 = arith.constant 1.000000e-07 : f32
    %460 = vector.broadcast %cst_26 : f32 to vector<8x128xf32>
    %461 = arith.maximumf %446, %460 : vector<8x128xf32>
    %462 = tpu.reciprocal %461 {approx = true} : vector<8x128xf32> -> vector<8x128xf32>
    %463 = arith.mulf %461, %462 : vector<8x128xf32>
    %cst_27 = arith.constant 2.000000e+00 : f32
    %464 = vector.broadcast %cst_27 : f32 to vector<8x128xf32>
    %465 = arith.subf %464, %463 : vector<8x128xf32>
    %466 = arith.mulf %462, %465 : vector<8x128xf32>
    %467 = arith.mulf %459, %466 : vector<8x128xf32>
    %cst_28 = arith.constant 0.000000e+00 : f32
    %468 = vector.broadcast %cst_28 : f32 to vector<8x128xf32>
    %469 = arith.mulf %467, %468 : vector<8x128xf32>
    %470 = arith.addf %432, %469 : vector<8x128xf32>
    %471 = arith.mulf %467, %442 : vector<8x128xf32>
    %472 = arith.addf %434, %471 : vector<8x128xf32>
    %473 = arith.mulf %467, %440 : vector<8x128xf32>
    %474 = arith.addf %436, %473 : vector<8x128xf32>
    %475 = arith.mulf %467, %438 : vector<8x128xf32>
    %476 = arith.addf %438, %475 : vector<8x128xf32>
    %477 = arith.mulf %467, %436 : vector<8x128xf32>
    %478 = arith.addf %440, %477 : vector<8x128xf32>
    %479 = arith.mulf %467, %434 : vector<8x128xf32>
    %480 = arith.addf %442, %479 : vector<8x128xf32>
    %481 = arith.mulf %467, %432 : vector<8x128xf32>
    %482 = arith.addf %468, %481 : vector<8x128xf32>
    %483 = arith.mulf %467, %467 : vector<8x128xf32>
    %cst_29 = arith.constant 1.000000e+00 : f32
    %484 = vector.broadcast %cst_29 : f32 to vector<8x128xf32>
    %485 = arith.subf %484, %483 : vector<8x128xf32>
    %486 = arith.mulf %485, %446 : vector<8x128xf32>
    %487 = arith.mulf %470, %282 : vector<8x128xf32>
    %488 = arith.mulf %472, %251 : vector<8x128xf32>
    %489 = arith.addf %487, %488 : vector<8x128xf32>
    %490 = arith.mulf %474, %220 : vector<8x128xf32>
    %491 = arith.addf %489, %490 : vector<8x128xf32>
    %492 = arith.mulf %476, %189 : vector<8x128xf32>
    %493 = arith.addf %491, %492 : vector<8x128xf32>
    %494 = arith.mulf %478, %158 : vector<8x128xf32>
    %495 = arith.addf %493, %494 : vector<8x128xf32>
    %496 = arith.mulf %480, %127 : vector<8x128xf32>
    %497 = arith.addf %495, %496 : vector<8x128xf32>
    %498 = arith.mulf %482, %96 : vector<8x128xf32>
    %499 = arith.addf %497, %498 : vector<8x128xf32>
    %cst_30 = arith.constant 0.000000e+00 : f32
    %500 = vector.broadcast %cst_30 : f32 to vector<8x128xf32>
    %501 = arith.subf %500, %499 : vector<8x128xf32>
    %cst_31 = arith.constant 1.000000e-07 : f32
    %502 = vector.broadcast %cst_31 : f32 to vector<8x128xf32>
    %503 = arith.maximumf %486, %502 : vector<8x128xf32>
    %504 = tpu.reciprocal %503 {approx = true} : vector<8x128xf32> -> vector<8x128xf32>
    %505 = arith.mulf %503, %504 : vector<8x128xf32>
    %cst_32 = arith.constant 2.000000e+00 : f32
    %506 = vector.broadcast %cst_32 : f32 to vector<8x128xf32>
    %507 = arith.subf %506, %505 : vector<8x128xf32>
    %508 = arith.mulf %504, %507 : vector<8x128xf32>
    %509 = arith.mulf %501, %508 : vector<8x128xf32>
    %cst_33 = arith.constant 0.000000e+00 : f32
    %510 = vector.broadcast %cst_33 : f32 to vector<8x128xf32>
    %511 = arith.mulf %509, %510 : vector<8x128xf32>
    %512 = arith.addf %470, %511 : vector<8x128xf32>
    %513 = arith.mulf %509, %482 : vector<8x128xf32>
    %514 = arith.addf %472, %513 : vector<8x128xf32>
    %515 = arith.mulf %509, %480 : vector<8x128xf32>
    %516 = arith.addf %474, %515 : vector<8x128xf32>
    %517 = arith.mulf %509, %478 : vector<8x128xf32>
    %518 = arith.addf %476, %517 : vector<8x128xf32>
    %519 = arith.mulf %509, %476 : vector<8x128xf32>
    %520 = arith.addf %478, %519 : vector<8x128xf32>
    %521 = arith.mulf %509, %474 : vector<8x128xf32>
    %522 = arith.addf %480, %521 : vector<8x128xf32>
    %523 = arith.mulf %509, %472 : vector<8x128xf32>
    %524 = arith.addf %482, %523 : vector<8x128xf32>
    %525 = arith.mulf %509, %470 : vector<8x128xf32>
    %526 = arith.addf %510, %525 : vector<8x128xf32>
    %527 = arith.mulf %509, %509 : vector<8x128xf32>
    %cst_34 = arith.constant 1.000000e+00 : f32
    %528 = vector.broadcast %cst_34 : f32 to vector<8x128xf32>
    %529 = arith.subf %528, %527 : vector<8x128xf32>
    %530 = arith.mulf %529, %486 : vector<8x128xf32>
    %531 = arith.mulf %512, %313 : vector<8x128xf32>
    %532 = arith.mulf %514, %282 : vector<8x128xf32>
    %533 = arith.addf %531, %532 : vector<8x128xf32>
    %534 = arith.mulf %516, %251 : vector<8x128xf32>
    %535 = arith.addf %533, %534 : vector<8x128xf32>
    %536 = arith.mulf %518, %220 : vector<8x128xf32>
    %537 = arith.addf %535, %536 : vector<8x128xf32>
    %538 = arith.mulf %520, %189 : vector<8x128xf32>
    %539 = arith.addf %537, %538 : vector<8x128xf32>
    %540 = arith.mulf %522, %158 : vector<8x128xf32>
    %541 = arith.addf %539, %540 : vector<8x128xf32>
    %542 = arith.mulf %524, %127 : vector<8x128xf32>
    %543 = arith.addf %541, %542 : vector<8x128xf32>
    %544 = arith.mulf %526, %96 : vector<8x128xf32>
    %545 = arith.addf %543, %544 : vector<8x128xf32>
    %cst_35 = arith.constant 0.000000e+00 : f32
    %546 = vector.broadcast %cst_35 : f32 to vector<8x128xf32>
    %547 = arith.subf %546, %545 : vector<8x128xf32>
    %cst_36 = arith.constant 1.000000e-07 : f32
    %548 = vector.broadcast %cst_36 : f32 to vector<8x128xf32>
    %549 = arith.maximumf %530, %548 : vector<8x128xf32>
    %550 = tpu.reciprocal %549 {approx = true} : vector<8x128xf32> -> vector<8x128xf32>
    %551 = arith.mulf %549, %550 : vector<8x128xf32>
    %cst_37 = arith.constant 2.000000e+00 : f32
    %552 = vector.broadcast %cst_37 : f32 to vector<8x128xf32>
    %553 = arith.subf %552, %551 : vector<8x128xf32>
    %554 = arith.mulf %550, %553 : vector<8x128xf32>
    %555 = arith.mulf %547, %554 : vector<8x128xf32>
    %cst_38 = arith.constant 0.000000e+00 : f32
    %556 = vector.broadcast %cst_38 : f32 to vector<8x128xf32>
    %557 = arith.mulf %555, %526 : vector<8x128xf32>
    %558 = arith.addf %514, %557 : vector<8x128xf32>
    %559 = arith.mulf %555, %524 : vector<8x128xf32>
    %560 = arith.addf %516, %559 : vector<8x128xf32>
    %561 = arith.mulf %555, %522 : vector<8x128xf32>
    %562 = arith.addf %518, %561 : vector<8x128xf32>
    %563 = arith.mulf %555, %520 : vector<8x128xf32>
    %564 = arith.addf %520, %563 : vector<8x128xf32>
    %565 = arith.mulf %555, %518 : vector<8x128xf32>
    %566 = arith.addf %522, %565 : vector<8x128xf32>
    %567 = arith.mulf %555, %516 : vector<8x128xf32>
    %568 = arith.addf %524, %567 : vector<8x128xf32>
    %569 = arith.mulf %555, %514 : vector<8x128xf32>
    %570 = arith.addf %526, %569 : vector<8x128xf32>
    %571 = arith.mulf %555, %512 : vector<8x128xf32>
    %572 = arith.addf %556, %571 : vector<8x128xf32>
    %573 = vector.shape_cast %558 : vector<8x128xf32> to vector<1x8x128xf32>
    %574 = vector.shape_cast %560 : vector<8x128xf32> to vector<1x8x128xf32>
    %575 = vector.shape_cast %562 : vector<8x128xf32> to vector<1x8x128xf32>
    %576 = vector.shape_cast %564 : vector<8x128xf32> to vector<1x8x128xf32>
    %577 = vector.shape_cast %566 : vector<8x128xf32> to vector<1x8x128xf32>
    %578 = vector.shape_cast %568 : vector<8x128xf32> to vector<1x8x128xf32>
    %579 = vector.shape_cast %570 : vector<8x128xf32> to vector<1x8x128xf32>
    %580 = vector.shape_cast %572 : vector<8x128xf32> to vector<1x8x128xf32>
    %581 = tpu.concatenate %573, %574, %575, %576, %577, %578, %579, %580 in 0 : vector<1x8x128xf32>, vector<1x8x128xf32>, vector<1x8x128xf32>, vector<1x8x128xf32>, vector<1x8x128xf32>, vector<1x8x128xf32>, vector<1x8x128xf32>, vector<1x8x128xf32> -> vector<8x8x128xf32>
    %582 = arith.index_cast %c0_i32 : i32 to index
    %c0_39 = arith.constant 0 : index
    %c0_40 = arith.constant 0 : index
    %c0_41 = arith.constant 0 : index
    %583 = vector.load %arg2[%582, %c0_39, %c0_40, %c0_41] : memref<1x8x8x128xf32, #tpu.memory_space<vmem>>, vector<1x8x8x128xf32>
    %584 = vector.shape_cast %583 : vector<1x8x8x128xf32> to vector<8x8x128xf32>
    %585 = vector.shape_cast %581 : vector<8x8x128xf32> to vector<1x8x8x128xf32>
    tpu.vector_store %arg2[%582, %c0_39, %c0_40, %c0_41], %585 {strides = array<i32>} : memref<1x8x8x128xf32, #tpu.memory_space<vmem>>, vector<1x8x8x128xf32>,
    %c1_i32 = arith.constant 1 : i32
    return
  }
  func.func @transform_0(%arg0: i32) -> (i32, i32, i32, i32) {
    %c0_i32 = arith.constant 0 : i32
    %c0_i32_0 = arith.constant 0 : i32
    %c0_i32_1 = arith.constant 0 : i32
    %c0_i32_2 = arith.constant 0 : i32
    return %arg0, %c0_i32, %c0_i32_0, %c0_i32_1 : i32, i32, i32, i32
  }
  func.func @transform_1(%arg0: i32) -> (i32, i32, i32, i32) {
    %c0_i32 = arith.constant 0 : i32
    %c0_i32_0 = arith.constant 0 : i32
    %c0_i32_1 = arith.constant 0 : i32
    %c0_i32_2 = arith.constant 0 : i32
    return %arg0, %c0_i32, %c0_i32_0, %c0_i32_1 : i32, i32, i32, i32
  }
}

</mosaic_0001>

<llo_original>
// kernel: lpc_forward.1
$region0: #{lpc_forward.1}
  #allocation0 [shape = 'u32[]', space=smem, size = 0x4, offset = 0x4, fixed_abs, tag = 'smem constant byte address 0x4 - core index']
  #allocation1 [shape = 'u32[144,128]{1,0:T(1,128)}', space=vmem, size = 0x12000, scoped, tag = 'internal scratch']
  %s0 = inlined_call_operand.vmem [shape: f32[1,16,8,128], index: 0, kind: input, shape index: {}]
  %s1 = inlined_call_operand.vmem [shape: f32[1,8,8,128], index: 1, kind: output, shape index: {}]
  %s2 = sld [smem:[#allocation0]]
  $region14: #{lpc_forward.1} parent=0
    _
  %s4 = ssub.s32 1, %s2
  %s5 = scalar_select 0, %s4, %s2
  // Predicated region
  $region2: #{lpc_forward.1} parent=0 // pred_check
    _
  $region3: #{lpc_forward.1} parent=0 // pred_check_branch
    %7 = sbr.rel (0) target = $region5
  $region4: #{lpc_forward.1} parent=0 // pred_region
    _
  $region5: #{lpc_forward.1} parent=0 // pred_fallthru
    _
  %v8 = vld [vmem:[%s0] sm:$0xff]
  %v9 = vld [vmem:[%s0 + $0x8] sm:$0xff]
  %v10 = vld [vmem:[%s0 + $0x10] sm:$0xff]
  %v11 = vld [vmem:[%s0 + $0x18] sm:$0xff]
  %v12 = vld [vmem:[%s0 + $0x20] sm:$0xff]
  %v13 = vld [vmem:[%s0 + $0x28] sm:$0xff]
  %v14 = vld [vmem:[%s0 + $0x30] sm:$0xff]
  %v15 = vld [vmem:[%s0 + $0x38] sm:$0xff]
  %v16 = vld [vmem:[%s0 + $0x40] sm:$0xff]
  %v17 = vld [vmem:[%s0 + $0x48] sm:$0xff]
  %v18 = vld [vmem:[%s0 + $0x50] sm:$0xff]
  %v19 = vld [vmem:[%s0 + $0x58] sm:$0xff]
  %v20 = vld [vmem:[%s0 + $0x60] sm:$0xff]
  %v21 = vld [vmem:[%s0 + $0x68] sm:$0xff]
  %v22 = vld [vmem:[%s0 + $0x70] sm:$0xff]
  %v23 = vld [vmem:[%s0 + $0x78] sm:$0xff]
  %v24 = vmul.f32 %v8, %v8
  %v25 = vmul.f32 %v9, %v9
  %v26 = vadd.f32 %v24, %v25
  %v27 = vmul.f32 %v10, %v10
  %v28 = vadd.f32 %v26, %v27
  %v29 = vmul.f32 %v11, %v11
  %v30 = vadd.f32 %v28, %v29
  %v31 = vmul.f32 %v12, %v12
  %v32 = vadd.f32 %v30, %v31
  %v33 = vmul.f32 %v13, %v13
  %v34 = vadd.f32 %v32, %v33
  %v35 = vmul.f32 %v14, %v14
  %v36 = vadd.f32 %v34, %v35
  %v37 = vmul.f32 %v15, %v15
  %v38 = vadd.f32 %v36, %v37
  %v39 = vmul.f32 %v16, %v16
  %v40 = vadd.f32 %v38, %v39
  %v41 = vmul.f32 %v17, %v17
  %v42 = vadd.f32 %v40, %v41
  %v43 = vmul.f32 %v18, %v18
  %v44 = vadd.f32 %v42, %v43
  %v45 = vmul.f32 %v19, %v19
  %v46 = vadd.f32 %v44, %v45
  %v47 = vmul.f32 %v20, %v20
  %v48 = vadd.f32 %v46, %v47
  %v49 = vmul.f32 %v21, %v21
  %v50 = vadd.f32 %v48, %v49
  %v51 = vmul.f32 %v22, %v22
  %v52 = vadd.f32 %v50, %v51
  %v53 = vmul.f32 %v23, %v23
  %v54 = vadd.f32 %v52, %v53
  %v55 = vmul.f32 %v8, %v9
  %v56 = vmul.f32 %v9, %v10
  %v57 = vadd.f32 %v55, %v56
  %v58 = vmul.f32 %v10, %v11
  %v59 = vadd.f32 %v57, %v58
  %v60 = vmul.f32 %v11, %v12
  %v61 = vadd.f32 %v59, %v60
  %v62 = vmul.f32 %v12, %v13
  %v63 = vadd.f32 %v61, %v62
  %v64 = vmul.f32 %v13, %v14
  %v65 = vadd.f32 %v63, %v64
  %v66 = vmul.f32 %v14, %v15
  %v67 = vadd.f32 %v65, %v66
  %v68 = vmul.f32 %v15, %v16
  %v69 = vadd.f32 %v67, %v68
  %v70 = vmul.f32 %v16, %v17
  %v71 = vadd.f32 %v69, %v70
  %v72 = vmul.f32 %v17, %v18
  %v73 = vadd.f32 %v71, %v72
  %v74 = vmul.f32 %v18, %v19
  %v75 = vadd.f32 %v73, %v74
  %v76 = vmul.f32 %v19, %v20
  %v77 = vadd.f32 %v75, %v76
  %v78 = vmul.f32 %v20, %v21
  %v79 = vadd.f32 %v77, %v78
  %v80 = vmul.f32 %v21, %v22
  %v81 = vadd.f32 %v79, %v80
  %v82 = vmul.f32 %v22, %v23
  %v83 = vadd.f32 %v81, %v82
  %v84 = vmul.f32 %v23, %v8
  %v85 = vadd.f32 %v83, %v84
  %v86 = vmul.f32 %v8, %v10
  %v87 = vmul.f32 %v9, %v11
  %v88 = vadd.f32 %v86, %v87
  %v89 = vmul.f32 %v10, %v12
  %v90 = vadd.f32 %v88, %v89
  %v91 = vmul.f32 %v11, %v13
  %v92 = vadd.f32 %v90, %v91
  %v93 = vmul.f32 %v12, %v14
  %v94 = vadd.f32 %v92, %v93
  %v95 = vmul.f32 %v13, %v15
  %v96 = vadd.f32 %v94, %v95
  %v97 = vmul.f32 %v14, %v16
  %v98 = vadd.f32 %v96, %v97
  %v99 = vmul.f32 %v15, %v17
  %v100 = vadd.f32 %v98, %v99
  %v101 = vmul.f32 %v16, %v18
  %v102 = vadd.f32 %v100, %v101
  %v103 = vmul.f32 %v17, %v19
  %v104 = vadd.f32 %v102, %v103
  %v105 = vmul.f32 %v18, %v20
  %v106 = vadd.f32 %v104, %v105
  %v107 = vmul.f32 %v19, %v21
  %v108 = vadd.f32 %v106, %v107
  %v109 = vmul.f32 %v20, %v22
  %v110 = vadd.f32 %v108, %v109
  %v111 = vmul.f32 %v21, %v23
  %v112 = vadd.f32 %v110, %v111
  %v113 = vmul.f32 %v22, %v8
  %v114 = vadd.f32 %v112, %v113
  %v115 = vmul.f32 %v23, %v9
  %v116 = vadd.f32 %v114, %v115
  %v117 = vmul.f32 %v8, %v11
  %v118 = vmul.f32 %v9, %v12
  %v119 = vadd.f32 %v117, %v118
  %v120 = vmul.f32 %v10, %v13
  %v121 = vadd.f32 %v119, %v120
  %v122 = vmul.f32 %v11, %v14
  %v123 = vadd.f32 %v121, %v122
  %v124 = vmul.f32 %v12, %v15
  %v125 = vadd.f32 %v123, %v124
  %v126 = vmul.f32 %v13, %v16
  %v127 = vadd.f32 %v125, %v126
  %v128 = vmul.f32 %v14, %v17
  %v129 = vadd.f32 %v127, %v128
  %v130 = vmul.f32 %v15, %v18
  %v131 = vadd.f32 %v129, %v130
  %v132 = vmul.f32 %v16, %v19
  %v133 = vadd.f32 %v131, %v132
  %v134 = vmul.f32 %v17, %v20
  %v135 = vadd.f32 %v133, %v134
  %v136 = vmul.f32 %v18, %v21
  %v137 = vadd.f32 %v135, %v136
  %v138 = vmul.f32 %v19, %v22
  %v139 = vadd.f32 %v137, %v138
  %v140 = vmul.f32 %v20, %v23
  %v141 = vadd.f32 %v139, %v140
  %v142 = vmul.f32 %v21, %v8
  %v143 = vadd.f32 %v141, %v142
  %v144 = vmul.f32 %v22, %v9
  %v145 = vadd.f32 %v143, %v144
  %v146 = vmul.f32 %v23, %v10
  %v147 = vadd.f32 %v145, %v146
  %v148 = vmul.f32 %v8, %v12
  %v149 = vmul.f32 %v9, %v13
  %v150 = vadd.f32 %v148, %v149
  %v151 = vmul.f32 %v10, %v14
  %v152 = vadd.f32 %v150, %v151
  %v153 = vmul.f32 %v11, %v15
  %v154 = vadd.f32 %v152, %v153
  %v155 = vmul.f32 %v12, %v16
  %v156 = vadd.f32 %v154, %v155
  %v157 = vmul.f32 %v13, %v17
  %v158 = vadd.f32 %v156, %v157
  %v159 = vmul.f32 %v14, %v18
  %v160 = vadd.f32 %v158, %v159
  %v161 = vmul.f32 %v15, %v19
  %v162 = vadd.f32 %v160, %v161
  %v163 = vmul.f32 %v16, %v20
  %v164 = vadd.f32 %v162, %v163
  %v165 = vmul.f32 %v17, %v21
  %v166 = vadd.f32 %v164, %v165
  %v167 = vmul.f32 %v18, %v22
  %v168 = vadd.f32 %v166, %v167
  %v169 = vmul.f32 %v19, %v23
  %v170 = vadd.f32 %v168, %v169
  %v171 = vmul.f32 %v20, %v8
  %v172 = vadd.f32 %v170, %v171
  %v173 = vmul.f32 %v21, %v9
  %v174 = vadd.f32 %v172, %v173
  %v175 = vmul.f32 %v22, %v10
  %v176 = vadd.f32 %v174, %v175
  %v177 = vmul.f32 %v23, %v11
  %v178 = vadd.f32 %v176, %v177
  %v179 = vmul.f32 %v8, %v13
  %v180 = vmul.f32 %v9, %v14
  %v181 = vadd.f32 %v179, %v180
  %v182 = vmul.f32 %v10, %v15
  %v183 = vadd.f32 %v181, %v182
  %v184 = vmul.f32 %v11, %v16
  %v185 = vadd.f32 %v183, %v184
  %v186 = vmul.f32 %v12, %v17
  %v187 = vadd.f32 %v185, %v186
  %v188 = vmul.f32 %v13, %v18
  %v189 = vadd.f32 %v187, %v188
  %v190 = vmul.f32 %v14, %v19
  %v191 = vadd.f32 %v189, %v190
  %v192 = vmul.f32 %v15, %v20
  %v193 = vadd.f32 %v191, %v192
  %v194 = vmul.f32 %v16, %v21
  %v195 = vadd.f32 %v193, %v194
  %v196 = vmul.f32 %v17, %v22
  %v197 = vadd.f32 %v195, %v196
  %v198 = vmul.f32 %v18, %v23
  %v199 = vadd.f32 %v197, %v198
  %v200 = vmul.f32 %v19, %v8
  %v201 = vadd.f32 %v199, %v200
  %v202 = vmul.f32 %v20, %v9
  %v203 = vadd.f32 %v201, %v202
  %v204 = vmul.f32 %v21, %v10
  %v205 = vadd.f32 %v203, %v204
  %v206 = vmul.f32 %v22, %v11
  %v207 = vadd.f32 %v205, %v206
  %v208 = vmul.f32 %v23, %v12
  %v209 = vadd.f32 %v207, %v208
  %v210 = vmul.f32 %v8, %v14
  %v211 = vmul.f32 %v9, %v15
  %v212 = vadd.f32 %v210, %v211
  %v213 = vmul.f32 %v10, %v16
  %v214 = vadd.f32 %v212, %v213
  %v215 = vmul.f32 %v11, %v17
  %v216 = vadd.f32 %v214, %v215
  %v217 = vmul.f32 %v12, %v18
  %v218 = vadd.f32 %v216, %v217
  %v219 = vmul.f32 %v13, %v19
  %v220 = vadd.f32 %v218, %v219
  %v221 = vmul.f32 %v14, %v20
  %v222 = vadd.f32 %v220, %v221
  %v223 = vmul.f32 %v15, %v21
  %v224 = vadd.f32 %v222, %v223
  %v225 = vmul.f32 %v16, %v22
  %v226 = vadd.f32 %v224, %v225
  %v227 = vmul.f32 %v17, %v23
  %v228 = vadd.f32 %v226, %v227
  %v229 = vmul.f32 %v18, %v8
  %v230 = vadd.f32 %v228, %v229
  %v231 = vmul.f32 %v19, %v9
  %v232 = vadd.f32 %v230, %v231
  %v233 = vmul.f32 %v20, %v10
  %v234 = vadd.f32 %v232, %v233
  %v235 = vmul.f32 %v21, %v11
  %v236 = vadd.f32 %v234, %v235
  %v237 = vmul.f32 %v22, %v12
  %v238 = vadd.f32 %v236, %v237
  %v239 = vmul.f32 %v23, %v13
  %v240 = vadd.f32 %v238, %v239
  %v241 = vmul.f32 %v8, %v15
  %v242 = vmul.f32 %v9, %v16
  %v243 = vadd.f32 %v241, %v242
  %v244 = vmul.f32 %v10, %v17
  %v245 = vadd.f32 %v243, %v244
  %v246 = vmul.f32 %v11, %v18
  %v247 = vadd.f32 %v245, %v246
  %v248 = vmul.f32 %v12, %v19
  %v249 = vadd.f32 %v247, %v248
  %v250 = vmul.f32 %v13, %v20
  %v251 = vadd.f32 %v249, %v250
  %v252 = vmul.f32 %v14, %v21
  %v253 = vadd.f32 %v251, %v252
  %v254 = vmul.f32 %v15, %v22
  %v255 = vadd.f32 %v253, %v254
  %v256 = vmul.f32 %v16, %v23
  %v257 = vadd.f32 %v255, %v256
  %v258 = vmul.f32 %v17, %v8
  %v259 = vadd.f32 %v257, %v258
  %v260 = vmul.f32 %v18, %v9
  %v261 = vadd.f32 %v259, %v260
  %v262 = vmul.f32 %v19, %v10
  %v263 = vadd.f32 %v261, %v262
  %v264 = vmul.f32 %v20, %v11
  %v265 = vadd.f32 %v263, %v264
  %v266 = vmul.f32 %v21, %v12
  %v267 = vadd.f32 %v265, %v266
  %v268 = vmul.f32 %v22, %v13
  %v269 = vadd.f32 %v267, %v268
  %v270 = vmul.f32 %v23, %v14
  %v271 = vadd.f32 %v269, %v270
  %v272 = vmul.f32 %v8, %v16
  %v273 = vmul.f32 %v9, %v17
  %v274 = vadd.f32 %v272, %v273
  %v275 = vmul.f32 %v10, %v18
  %v276 = vadd.f32 %v274, %v275
  %v277 = vmul.f32 %v11, %v19
  %v278 = vadd.f32 %v276, %v277
  %v279 = vmul.f32 %v12, %v20
  %v280 = vadd.f32 %v278, %v279
  %v281 = vmul.f32 %v13, %v21
  %v282 = vadd.f32 %v280, %v281
  %v283 = vmul.f32 %v14, %v22
  %v284 = vadd.f32 %v282, %v283
  %v285 = vmul.f32 %v15, %v23
  %v286 = vadd.f32 %v284, %v285
  %v287 = vadd.f32 %v286, %v272
  %v288 = vadd.f32 %v287, %v273
  %v289 = vadd.f32 %v288, %v275
  %v290 = vadd.f32 %v289, %v277
  %v291 = vadd.f32 %v290, %v279
  %v292 = vadd.f32 %v291, %v281
  %v293 = vadd.f32 %v292, %v283
  %v294 = vadd.f32 %v293, %v285
  %v295 = vsub.f32 0.0, %v85
  %v296 = vmax.f32 %v54, 1e-07
  %v297 = vrcp.pop %v296
  %v298 = vmul.f32 %v296, %v297
  %v299 = vsub.f32 2.0, %v298
  %v300 = vmul.f32 %v297, %v299
  %v301 = vmul.f32 %v295, %v300
  %v302 = vmul.f32 %v85, %v301
  %v303 = vadd.f32 %v54, %v302
  %v304 = vadd.f32 %v116, %v302
  %v305 = vsub.f32 0.0, %v304
  %v306 = vmax.f32 %v303, 1e-07
  %v307 = vrcp.pop %v306
  %v308 = vmul.f32 %v306, %v307
  %v309 = vsub.f32 2.0, %v308
  %v310 = vmul.f32 %v307, %v309
  %v311 = vmul.f32 %v305, %v310
  %v312 = vmul.f32 %v311, 0.0
  %v313 = vadd.f32 %v312, 1.0
  %v314 = vmul.f32 %v311, %v301
  %v315 = vadd.f32 %v301, %v314
  %v316 = vadd.f32 %v311, 0.0
  %v317 = vmul.f32 %v311, %v311
  %v318 = vsub.f32 1.0, %v317
  %v319 = vmul.f32 %v318, %v303
  %v320 = vmul.f32 %v313, %v147
  %v321 = vmul.f32 %v315, %v116
  %v322 = vadd.f32 %v320, %v321
  %v323 = vmul.f32 %v316, %v85
  %v324 = vadd.f32 %v322, %v323
  %v325 = vsub.f32 0.0, %v324
  %v326 = vmax.f32 %v319, 1e-07
  %v327 = vrcp.pop %v326
  %v328 = vmul.f32 %v326, %v327
  %v329 = vsub.f32 2.0, %v328
  %v330 = vmul.f32 %v327, %v329
  %v331 = vmul.f32 %v325, %v330
  %v332 = vmul.f32 %v331, 0.0
  %v333 = vadd.f32 %v313, %v332
  %v334 = vmul.f32 %v331, %v316
  %v335 = vadd.f32 %v315, %v334
  %v336 = vmul.f32 %v331, %v315
  %v337 = vadd.f32 %v316, %v336
  %v338 = vmul.f32 %v331, %v313
  %v339 = vadd.f32 %v338, 0.0
  %v340 = vmul.f32 %v331, %v331
  %v341 = vsub.f32 1.0, %v340
  %v342 = vmul.f32 %v341, %v319
  %v343 = vmul.f32 %v333, %v178
  %v344 = vmul.f32 %v335, %v147
  %v345 = vadd.f32 %v343, %v344
  %v346 = vmul.f32 %v337, %v116
  %v347 = vadd.f32 %v345, %v346
  %v348 = vmul.f32 %v339, %v85
  %v349 = vadd.f32 %v347, %v348
  %v350 = vsub.f32 0.0, %v349
  %v351 = vmax.f32 %v342, 1e-07
  %v352 = vrcp.pop %v351
  %v353 = vmul.f32 %v351, %v352
  %v354 = vsub.f32 2.0, %v353
  %v355 = vmul.f32 %v352, %v354
  %v356 = vmul.f32 %v350, %v355
  %v357 = vmul.f32 %v356, 0.0
  %v358 = vadd.f32 %v333, %v357
  %v359 = vmul.f32 %v356, %v339
  %v360 = vadd.f32 %v335, %v359
  %v361 = vmul.f32 %v356, %v337
  %v362 = vadd.f32 %v337, %v361
  %v363 = vmul.f32 %v356, %v335
  %v364 = vadd.f32 %v339, %v363
  %v365 = vmul.f32 %v356, %v333
  %v366 = vadd.f32 %v365, 0.0
  %v367 = vmul.f32 %v356, %v356
  %v368 = vsub.f32 1.0, %v367
  %v369 = vmul.f32 %v368, %v342
  %v370 = vmul.f32 %v358, %v209
  %v371 = vmul.f32 %v360, %v178
  %v372 = vadd.f32 %v370, %v371
  %v373 = vmul.f32 %v362, %v147
  %v374 = vadd.f32 %v372, %v373
  %v375 = vmul.f32 %v364, %v116
  %v376 = vadd.f32 %v374, %v375
  %v377 = vmul.f32 %v366, %v85
  %v378 = vadd.f32 %v376, %v377
  %v379 = vsub.f32 0.0, %v378
  %v380 = vmax.f32 %v369, 1e-07
  %v381 = vrcp.pop %v380
  %v382 = vmul.f32 %v380, %v381
  %v383 = vsub.f32 2.0, %v382
  %v384 = vmul.f32 %v381, %v383
  %v385 = vmul.f32 %v379, %v384
  %v386 = vmul.f32 %v385, 0.0
  %v387 = vadd.f32 %v358, %v386
  %v388 = vmul.f32 %v385, %v366
  %v389 = vadd.f32 %v360, %v388
  %v390 = vmul.f32 %v385, %v364
  %v391 = vadd.f32 %v362, %v390
  %v392 = vmul.f32 %v385, %v362
  %v393 = vadd.f32 %v364, %v392
  %v394 = vmul.f32 %v385, %v360
  %v395 = vadd.f32 %v366, %v394
  %v396 = vmul.f32 %v385, %v358
  %v397 = vadd.f32 %v396, 0.0
  %v398 = vmul.f32 %v385, %v385
  %v399 = vsub.f32 1.0, %v398
  %v400 = vmul.f32 %v399, %v369
  %v401 = vmul.f32 %v387, %v240
  %v402 = vmul.f32 %v389, %v209
  %v403 = vadd.f32 %v401, %v402
  %v404 = vmul.f32 %v391, %v178
  %v405 = vadd.f32 %v403, %v404
  %v406 = vmul.f32 %v393, %v147
  %v407 = vadd.f32 %v405, %v406
  %v408 = vmul.f32 %v395, %v116
  %v409 = vadd.f32 %v407, %v408
  %v410 = vmul.f32 %v397, %v85
  %v411 = vadd.f32 %v409, %v410
  %v412 = vsub.f32 0.0, %v411
  %v413 = vmax.f32 %v400, 1e-07
  %v414 = vrcp.pop %v413
  %v415 = vmul.f32 %v413, %v414
  %v416 = vsub.f32 2.0, %v415
  %v417 = vmul.f32 %v414, %v416
  %v418 = vmul.f32 %v412, %v417
  %v419 = vmul.f32 %v418, 0.0
  %v420 = vadd.f32 %v387, %v419
  %v421 = vmul.f32 %v418, %v397
  %v422 = vadd.f32 %v389, %v421
  %v423 = vmul.f32 %v418, %v395
  %v424 = vadd.f32 %v391, %v423
  %v425 = vmul.f32 %v418, %v393
  %v426 = vadd.f32 %v393, %v425
  %v427 = vmul.f32 %v418, %v391
  %v428 = vadd.f32 %v395, %v427
  %v429 = vmul.f32 %v418, %v389
  %v430 = vadd.f32 %v397, %v429
  %v431 = vmul.f32 %v418, %v387
  %v432 = vadd.f32 %v431, 0.0
  %v433 = vmul.f32 %v418, %v418
  %v434 = vsub.f32 1.0, %v433
  %v435 = vmul.f32 %v434, %v400
  %v436 = vmul.f32 %v420, %v271
  %v437 = vmul.f32 %v422, %v240
  %v438 = vadd.f32 %v436, %v437
  %v439 = vmul.f32 %v424, %v209
  %v440 = vadd.f32 %v438, %v439
  %v441 = vmul.f32 %v426, %v178
  %v442 = vadd.f32 %v440, %v441
  %v443 = vmul.f32 %v428, %v147
  %v444 = vadd.f32 %v442, %v443
  %v445 = vmul.f32 %v430, %v116
  %v446 = vadd.f32 %v444, %v445
  %v447 = vmul.f32 %v432, %v85
  %v448 = vadd.f32 %v446, %v447
  %v449 = vsub.f32 0.0, %v448
  %v450 = vmax.f32 %v435, 1e-07
  %v451 = vrcp.pop %v450
  %v452 = vmul.f32 %v450, %v451
  %v453 = vsub.f32 2.0, %v452
  %v454 = vmul.f32 %v451, %v453
  %v455 = vmul.f32 %v449, %v454
  %v456 = vmul.f32 %v455, 0.0
  %v457 = vadd.f32 %v420, %v456
  %v458 = vmul.f32 %v455, %v432
  %v459 = vadd.f32 %v422, %v458
  %v460 = vmul.f32 %v455, %v430
  %v461 = vadd.f32 %v424, %v460
  %v462 = vmul.f32 %v455, %v428
  %v463 = vadd.f32 %v426, %v462
  %v464 = vmul.f32 %v455, %v426
  %v465 = vadd.f32 %v428, %v464
  %v466 = vmul.f32 %v455, %v424
  %v467 = vadd.f32 %v430, %v466
  %v468 = vmul.f32 %v455, %v422
  %v469 = vadd.f32 %v432, %v468
  %v470 = vmul.f32 %v455, %v420
  %v471 = vadd.f32 %v470, 0.0
  %v472 = vmul.f32 %v455, %v455
  %v473 = vsub.f32 1.0, %v472
  %v474 = vmul.f32 %v473, %v435
  %v475 = vmul.f32 %v457, %v294
  %v476 = vmul.f32 %v459, %v271
  %v477 = vadd.f32 %v475, %v476
  %v478 = vmul.f32 %v461, %v240
  %v479 = vadd.f32 %v477, %v478
  %v480 = vmul.f32 %v463, %v209
  %v481 = vadd.f32 %v479, %v480
  %v482 = vmul.f32 %v465, %v178
  %v483 = vadd.f32 %v481, %v482
  %v484 = vmul.f32 %v467, %v147
  %v485 = vadd.f32 %v483, %v484
  %v486 = vmul.f32 %v469, %v116
  %v487 = vadd.f32 %v485, %v486
  %v488 = vmul.f32 %v471, %v85
  %v489 = vadd.f32 %v487, %v488
  %v490 = vsub.f32 0.0, %v489
  %v491 = vmax.f32 %v474, 1e-07
  %v492 = vrcp.pop %v491
  %v493 = vmul.f32 %v491, %v492
  %v494 = vsub.f32 2.0, %v493
  %v495 = vmul.f32 %v492, %v494
  %v496 = vmul.f32 %v490, %v495
  %v497 = vmul.f32 %v496, %v471
  %v498 = vadd.f32 %v459, %v497
  %v499 = vmul.f32 %v496, %v469
  %v500 = vadd.f32 %v461, %v499
  %v501 = vmul.f32 %v496, %v467
  %v502 = vadd.f32 %v463, %v501
  %v503 = vmul.f32 %v496, %v465
  %v504 = vadd.f32 %v465, %v503
  %v505 = vmul.f32 %v496, %v463
  %v506 = vadd.f32 %v467, %v505
  %v507 = vmul.f32 %v496, %v461
  %v508 = vadd.f32 %v469, %v507
  %v509 = vmul.f32 %v496, %v459
  %v510 = vadd.f32 %v471, %v509
  %v511 = vmul.f32 %v496, %v457
  %v512 = vadd.f32 %v511, 0.0
  %513 = vst [vmem:[%s1] sm:$0xff] %v498
  %514 = vst [vmem:[%s1 + $0x8] sm:$0xff] %v500
  %515 = vst [vmem:[%s1 + $0x10] sm:$0xff] %v502
  %516 = vst [vmem:[%s1 + $0x18] sm:$0xff] %v504
  %517 = vst [vmem:[%s1 + $0x20] sm:$0xff] %v506
  %518 = vst [vmem:[%s1 + $0x28] sm:$0xff] %v508
  %519 = vst [vmem:[%s1 + $0x30] sm:$0xff] %v510
  %520 = vst [vmem:[%s1 + $0x38] sm:$0xff] %v512
  // Predicated region
  $region6: #{lpc_forward.1} parent=0 // pred_check
    _
  $region7: #{lpc_forward.1} parent=0 // pred_check_branch
    %522 = sbr.rel (0) target = $region9
  $region8: #{lpc_forward.1} parent=0 // pred_region
    _
  $region9: #{lpc_forward.1} parent=0 // pred_fallthru
    _
  // Predicated region
  $region10: #{lpc_forward.1} parent=0 // pred_check
    _
  $region11: #{lpc_forward.1} parent=0 // pred_check_branch
    %524 = sbr.rel (0) target = $region13
  $region12: #{lpc_forward.1} parent=0 // pred_region
    _
  $region13: #{lpc_forward.1} parent=0 // pred_fallthru
    _

</llo_original>
